<compile_context>
chip_gen: v7x
topology: tpu7x:2x2x1
jax: 0.10.0
libtpu: 0.0.40
codegen_flags: <defaults>
</compile_context>

<pallas_src>
import numpy as np

import jax
import jax.numpy as jnp
from jax.experimental import pallas as pl
from jax.experimental.pallas import tpu as pltpu


def _yolo_decode_kernel(pred_ref, sign_ref, coef_ref, add_ref, out_ref):
    """Decode one (BS, D, HW) block of raw YOLO predictions.

    pred_ref: (BS, D, HW) raw network outputs (any float dtype)
    sign_ref: (1,  D, 1)  +1 for w/h fields, -1 otherwise
    coef_ref: (BS, D, 1)  stride / anchor_w / anchor_h / 1 per (slab, field)
    add_ref : (1,  D, HW) grid_x*stride / grid_y*stride on fields 0/1, else 0
    out_ref : (BS, HW, D) decoded output (transpose fused here)
    """
    p = pred_ref[...].astype(jnp.float32)          # (BS, D, HW)
    sign = sign_ref[...]                           # (1, D, 1)

    # One transcendental pass: exp(p) on w/h fields, exp(-p) elsewhere so the
    # sigmoid is 1/(1+E) via an exact reciprocal (keeps 1e-4 accuracy).
    e = jnp.exp(p * sign)
    sig = pl.reciprocal(1.0 + e)
    val = jnp.where(sign > 0.0, e, sig)            # e for w/h, sigmoid else

    # field 0/1: sigmoid*stride + grid*stride ; 2/3: exp*anchor ; >=4: sigmoid
    res = val * coef_ref[...] + add_ref[...]       # (BS, D, HW), single FMA

    # Fused layout conversion: per-slab (D, HW) -> (HW, D) 2-D transposes.
    for s in range(res.shape[0]):                  # static unroll over block
        out_ref[s] = res[s].T.astype(out_ref.dtype)


def _round_up(v, m):
    return ((v + m - 1) // m) * m


class YOLOLayer2Pallas:
    """JAX/Pallas port of YOLOLayer2 (inference path)."""

    def __init__(self, anchors, num_classes, img_dim=416, out_dtype=jnp.float32):
        self.anchors = [(float(w), float(h)) for (w, h) in anchors]
        self.num_anchors = len(self.anchors)
        self.num_classes = num_classes
        self.img_dim = img_dim
        self.out_dtype = out_dtype

    def __call__(self, x, targets=None, img_dim=None):
        # TODO(synk): training path (targets is not None) depends on
        # `build_targets`, which is not part of the module; only the
        # inference decode (targets=None) is implemented.
        assert targets is None
        if img_dim is not None:
            self.img_dim = img_dim

        N, C, g, g2 = x.shape
        assert g == g2
        A = self.num_anchors
        D = self.num_classes + 5
        assert C == A * D
        HW = g * g
        stride = float(self.img_dim) / float(g)

        # Free reshape of NCHW: (N, A*D, g, g) -> (N*A, D, HW).
        pred = x.reshape(N * A, D, HW)

        # ---- compile-time constant tables (replace all in-kernel iotas) ----
        sign_np = np.full((1, D, 1), -1.0, dtype=np.float32)
        sign_np[0, 2:4, 0] = 1.0                              # w/h fields

        coef_row = np.ones((A, D), dtype=np.float32)
        coef_row[:, 0] = stride
        coef_row[:, 1] = stride
        coef_row[:, 2] = [a[0] for a in self.anchors]         # unscaled anchor_w
        coef_row[:, 3] = [a[1] for a in self.anchors]         # unscaled anchor_h
        coef_np = np.tile(coef_row, (N, 1)).reshape(N * A, D, 1)

        gx = np.tile(np.arange(g, dtype=np.float32), g) * stride      # col
        gy = np.repeat(np.arange(g, dtype=np.float32), g) * stride    # row
        add_np = np.zeros((1, D, HW), dtype=np.float32)
        add_np[0, 0, :] = gx
        add_np[0, 1, :] = gy

        sign_t = jnp.asarray(sign_np)
        coef_t = jnp.asarray(coef_np)
        add_t = jnp.asarray(add_np)

        # ---- generation-aware block sizing over (N*A) slabs ----
        total = N * A
        in_slab = _round_up(D, 8) * _round_up(HW, 128) * 4     # (D, HW) tile
        out_slab = _round_up(HW, 8) * _round_up(D, 128) * 4    # (HW, D) tile
        # 2x (in + out) double-buffered must fit the v5e 16 MiB scoped default
        # (leave headroom for the small tables + internal scratch).
        bs = max(1, (10 * 1024 * 1024) // (2 * (in_slab + out_slab)))
        bs = min(bs, total, 32)                                # bound unrolling
        try:
            kind = jax.devices()[0].device_kind.lower()
        except Exception:
            kind = ""
        if ("v7" in kind or "7x" in kind) and total >= 2:
            # dual-TC chip: keep at least 2 parallel grid steps.
            bs = min(bs, pl.cdiv(total, 2))
        n_steps = pl.cdiv(total, bs)                           # ragged OK

        n_elem = N * A * D * HW
        out_dtype = self.out_dtype
        bytes_accessed = int(
            x.size * x.dtype.itemsize
            + n_elem * jnp.dtype(out_dtype).itemsize
            + (sign_t.size + coef_t.size + add_t.size) * 4)
        cost = pl.CostEstimate(flops=6 * n_elem,
                               transcendentals=2 * n_elem,
                               bytes_accessed=bytes_accessed)

        out = pl.pallas_call(
            _yolo_decode_kernel,
            out_shape=jax.ShapeDtypeStruct((N * A, HW, D), out_dtype),
            grid=(n_steps,),
            in_specs=[
                pl.BlockSpec((bs, D, HW), lambda i: (i, 0, 0)),
                pl.BlockSpec((1, D, 1), lambda i: (0, 0, 0)),
                pl.BlockSpec((bs, D, 1), lambda i: (i, 0, 0)),
                pl.BlockSpec((1, D, HW), lambda i: (0, 0, 0)),
            ],
            out_specs=pl.BlockSpec((bs, HW, D), lambda i: (i, 0, 0)),
            compiler_params=pltpu.CompilerParams(
                dimension_semantics=("parallel",)),
            cost_estimate=cost,
        )(pred, sign_t, coef_t, add_t)

        # Only free reshapes remain: (N*A, HW, D) -> (N, A*g*g, 5+num_classes).
        output = out.reshape(N, A * HW, D)
        return output, 0


def _reference(layer, x):
    """Plain-JAX reference mirroring the PyTorch forward (targets=None)."""
    N, C, g, _ = x.shape
    A, D = layer.num_anchors, layer.num_classes + 5
    stride = float(layer.img_dim) / g
    pred = jnp.transpose(x.reshape(N, A, D, g, g), (0, 1, 3, 4, 2)).astype(jnp.float32)
    sx = jax.nn.sigmoid(pred[..., 0])
    sy = jax.nn.sigmoid(pred[..., 1])
    w = pred[..., 2]
    h = pred[..., 3]
    conf = jax.nn.sigmoid(pred[..., 4])
    cls = jax.nn.sigmoid(pred[..., 5:])
    grid_x = jnp.tile(jnp.arange(g, dtype=jnp.float32), (g, 1)).reshape(1, 1, g, g)
    grid_y = grid_x.transpose(0, 1, 3, 2)
    anc = jnp.asarray(layer.anchors, dtype=jnp.float32) / stride
    aw = anc[:, 0].reshape(1, A, 1, 1)
    ah = anc[:, 1].reshape(1, A, 1, 1)
    boxes = jnp.stack([sx + grid_x, sy + grid_y, jnp.exp(w) * aw, jnp.exp(h) * ah], axis=-1)
    return jnp.concatenate([
        boxes.reshape(N, -1, 4) * stride,
        conf.reshape(N, -1, 1),
        cls.reshape(N, -1, layer.num_classes),
    ], axis=-1)


if __name__ == "__main__":
    # Small but shape-consistent config:
    #   num_anchors = 3, num_classes = 11  -> channels = 3 * (11 + 5) = 48
    #   grid = 16, batch = 2, img_dim = 64 -> stride = 4.0
    anchors = [(10.0, 13.0), (16.0, 30.0), (33.0, 23.0)]
    num_classes = 11
    img_dim = 64
    N, g = 2, 16
    C = len(anchors) * (num_classes + 5)

    key = jax.random.PRNGKey(0)
    x = jax.random.normal(key, (N, C, g, g), dtype=jnp.float32)

    layer = YOLOLayer2Pallas(anchors, num_classes, img_dim=img_dim)
    output, loss = layer(x, targets=None, img_dim=img_dim)
    output = jax.block_until_ready(output)

    ref = jax.block_until_ready(_reference(layer, x))
    assert output.shape == (N, len(anchors) * g * g, num_classes + 5)
    assert jnp.allclose(output, ref, atol=1e-4, rtol=1e-4)

    print("KERNEL_OK")
</pallas_src>

<mosaic_0001>
module attributes {stable_mosaic.version = 11 : i64} {
  func.func @_yolo_decode_kernel(%arg0: i32, %arg1: memref<6x16x256xf32, #tpu.memory_space<vmem>>, %arg2: memref<1x16x1xf32, #tpu.memory_space<vmem>>, %arg3: memref<6x16x1xf32, #tpu.memory_space<vmem>>, %arg4: memref<1x16x256xf32, #tpu.memory_space<vmem>>, %arg5: memref<6x256x16xf32, #tpu.memory_space<vmem>>) attributes {dimension_semantics = [#tpu.dimension_semantics<parallel>], iteration_bounds = array<i64: 1>, scalar_prefetch = 0 : i64, scratch_operands = 0 : i64, tpu.core_type = #tpu.core_type<tc>, window_params = [{transform_indices = @transform_0, window_bounds = array<i64: 6, 16, 256>}, {pipeline_mode = #tpu.pipeline_mode<synchronous>, transform_indices = @transform_1, window_bounds = array<i64: 1, 16, 1>}, {transform_indices = @transform_2, window_bounds = array<i64: 6, 16, 1>}, {pipeline_mode = #tpu.pipeline_mode<synchronous>, transform_indices = @transform_3, window_bounds = array<i64: 1, 16, 256>}, {transform_indices = @transform_4, window_bounds = array<i64: 6, 256, 16>}]} {
    %c0 = arith.constant 0 : index
    %c0_0 = arith.constant 0 : index
    %c0_1 = arith.constant 0 : index
    %0 = vector.load %arg1[%c0, %c0_0, %c0_1] : memref<6x16x256xf32, #tpu.memory_space<vmem>>, vector<6x16x256xf32>
    %c0_2 = arith.constant 0 : index
    %c0_3 = arith.constant 0 : index
    %c0_4 = arith.constant 0 : index
    %1 = vector.load %arg2[%c0_2, %c0_3, %c0_4] : memref<1x16x1xf32, #tpu.memory_space<vmem>>, vector<1x16x1xf32>
    %2 = vector.broadcast %1 : vector<1x16x1xf32> to vector<6x16x256xf32>
    %3 = arith.mulf %0, %2 : vector<6x16x256xf32>
    %4 = math.exp %3 : vector<6x16x256xf32>
    %cst = arith.constant 1.000000e+00 : f32
    %5 = vector.broadcast %cst : f32 to vector<6x16x256xf32>
    %6 = arith.addf %5, %4 : vector<6x16x256xf32>
    %7 = tpu.reciprocal %6 : vector<6x16x256xf32> -> vector<6x16x256xf32>
    %cst_5 = arith.constant 0.000000e+00 : f32
    %8 = vector.broadcast %cst_5 : f32 to vector<1x16x1xf32>
    %9 = arith.cmpf ogt, %1, %8 : vector<1x16x1xf32>
    %10 = vector.shape_cast %9 : vector<1x16x1xi1> to vector<1x16x1xi1>
    %11 = vector.broadcast %10 : vector<1x16x1xi1> to vector<6x16x256xi1>
    %12 = arith.select %11, %4, %7 : vector<6x16x256xi1>, vector<6x16x256xf32>
    %c0_6 = arith.constant 0 : index
    %c0_7 = arith.constant 0 : index
    %c0_8 = arith.constant 0 : index
    %13 = vector.load %arg3[%c0_6, %c0_7, %c0_8] : memref<6x16x1xf32, #tpu.memory_space<vmem>>, vector<6x16x1xf32>
    %14 = vector.broadcast %13 : vector<6x16x1xf32> to vector<6x16x256xf32>
    %15 = arith.mulf %12, %14 : vector<6x16x256xf32>
    %c0_9 = arith.constant 0 : index
    %c0_10 = arith.constant 0 : index
    %c0_11 = arith.constant 0 : index
    %16 = vector.load %arg4[%c0_9, %c0_10, %c0_11] : memref<1x16x256xf32, #tpu.memory_space<vmem>>, vector<1x16x256xf32>
    %17 = vector.broadcast %16 : vector<1x16x256xf32> to vector<6x16x256xf32>
    %18 = arith.addf %15, %17 : vector<6x16x256xf32>
    %19 = vector.extract_strided_slice %18 {offsets = [0, 0, 0], sizes = [1, 16, 256], strides = [1, 1, 1]} : vector<6x16x256xf32> to vector<1x16x256xf32>
    %20 = vector.shape_cast %19 : vector<1x16x256xf32> to vector<16x256xf32>
    %21 = tpu.transpose %20, [1, 0] : vector<16x256xf32> -> vector<256x16xf32>
    %c0_12 = arith.constant 0 : index
    %c0_13 = arith.constant 0 : index
    %c0_14 = arith.constant 0 : index
    %22 = vector.load %arg5[%c0_12, %c0_13, %c0_14] : memref<6x256x16xf32, #tpu.memory_space<vmem>>, vector<1x256x16xf32>
    %23 = vector.shape_cast %22 : vector<1x256x16xf32> to vector<256x16xf32>
    %24 = vector.shape_cast %21 : vector<256x16xf32> to vector<1x256x16xf32>
    tpu.vector_store %arg5[%c0_12, %c0_13, %c0_14], %24 {strides = array<i32>} : memref<6x256x16xf32, #tpu.memory_space<vmem>>, vector<1x256x16xf32>,
    %25 = vector.extract_strided_slice %18 {offsets = [1, 0, 0], sizes = [1, 16, 256], strides = [1, 1, 1]} : vector<6x16x256xf32> to vector<1x16x256xf32>
    %26 = vector.shape_cast %25 : vector<1x16x256xf32> to vector<16x256xf32>
    %27 = tpu.transpose %26, [1, 0] : vector<16x256xf32> -> vector<256x16xf32>
    %c1 = arith.constant 1 : index
    %c0_15 = arith.constant 0 : index
    %c0_16 = arith.constant 0 : index
    %28 = vector.load %arg5[%c1, %c0_15, %c0_16] : memref<6x256x16xf32, #tpu.memory_space<vmem>>, vector<1x256x16xf32>
    %29 = vector.shape_cast %28 : vector<1x256x16xf32> to vector<256x16xf32>
    %30 = vector.shape_cast %27 : vector<256x16xf32> to vector<1x256x16xf32>
    tpu.vector_store %arg5[%c1, %c0_15, %c0_16], %30 {strides = array<i32>} : memref<6x256x16xf32, #tpu.memory_space<vmem>>, vector<1x256x16xf32>,
    %31 = vector.extract_strided_slice %18 {offsets = [2, 0, 0], sizes = [1, 16, 256], strides = [1, 1, 1]} : vector<6x16x256xf32> to vector<1x16x256xf32>
    %32 = vector.shape_cast %31 : vector<1x16x256xf32> to vector<16x256xf32>
    %33 = tpu.transpose %32, [1, 0] : vector<16x256xf32> -> vector<256x16xf32>
    %c2 = arith.constant 2 : index
    %c0_17 = arith.constant 0 : index
    %c0_18 = arith.constant 0 : index
    %34 = vector.load %arg5[%c2, %c0_17, %c0_18] : memref<6x256x16xf32, #tpu.memory_space<vmem>>, vector<1x256x16xf32>
    %35 = vector.shape_cast %34 : vector<1x256x16xf32> to vector<256x16xf32>
    %36 = vector.shape_cast %33 : vector<256x16xf32> to vector<1x256x16xf32>
    tpu.vector_store %arg5[%c2, %c0_17, %c0_18], %36 {strides = array<i32>} : memref<6x256x16xf32, #tpu.memory_space<vmem>>, vector<1x256x16xf32>,
    %37 = vector.extract_strided_slice %18 {offsets = [3, 0, 0], sizes = [1, 16, 256], strides = [1, 1, 1]} : vector<6x16x256xf32> to vector<1x16x256xf32>
    %38 = vector.shape_cast %37 : vector<1x16x256xf32> to vector<16x256xf32>
    %39 = tpu.transpose %38, [1, 0] : vector<16x256xf32> -> vector<256x16xf32>
    %c3 = arith.constant 3 : index
    %c0_19 = arith.constant 0 : index
    %c0_20 = arith.constant 0 : index
    %40 = vector.load %arg5[%c3, %c0_19, %c0_20] : memref<6x256x16xf32, #tpu.memory_space<vmem>>, vector<1x256x16xf32>
    %41 = vector.shape_cast %40 : vector<1x256x16xf32> to vector<256x16xf32>
    %42 = vector.shape_cast %39 : vector<256x16xf32> to vector<1x256x16xf32>
    tpu.vector_store %arg5[%c3, %c0_19, %c0_20], %42 {strides = array<i32>} : memref<6x256x16xf32, #tpu.memory_space<vmem>>, vector<1x256x16xf32>,
    %43 = vector.extract_strided_slice %18 {offsets = [4, 0, 0], sizes = [1, 16, 256], strides = [1, 1, 1]} : vector<6x16x256xf32> to vector<1x16x256xf32>
    %44 = vector.shape_cast %43 : vector<1x16x256xf32> to vector<16x256xf32>
    %45 = tpu.transpose %44, [1, 0] : vector<16x256xf32> -> vector<256x16xf32>
    %c4 = arith.constant 4 : index
    %c0_21 = arith.constant 0 : index
    %c0_22 = arith.constant 0 : index
    %46 = vector.load %arg5[%c4, %c0_21, %c0_22] : memref<6x256x16xf32, #tpu.memory_space<vmem>>, vector<1x256x16xf32>
    %47 = vector.shape_cast %46 : vector<1x256x16xf32> to vector<256x16xf32>
    %48 = vector.shape_cast %45 : vector<256x16xf32> to vector<1x256x16xf32>
    tpu.vector_store %arg5[%c4, %c0_21, %c0_22], %48 {strides = array<i32>} : memref<6x256x16xf32, #tpu.memory_space<vmem>>, vector<1x256x16xf32>,
    %49 = vector.extract_strided_slice %18 {offsets = [5, 0, 0], sizes = [1, 16, 256], strides = [1, 1, 1]} : vector<6x16x256xf32> to vector<1x16x256xf32>
    %50 = vector.shape_cast %49 : vector<1x16x256xf32> to vector<16x256xf32>
    %51 = tpu.transpose %50, [1, 0] : vector<16x256xf32> -> vector<256x16xf32>
    %c5 = arith.constant 5 : index
    %c0_23 = arith.constant 0 : index
    %c0_24 = arith.constant 0 : index
    %52 = vector.load %arg5[%c5, %c0_23, %c0_24] : memref<6x256x16xf32, #tpu.memory_space<vmem>>, vector<1x256x16xf32>
    %53 = vector.shape_cast %52 : vector<1x256x16xf32> to vector<256x16xf32>
    %54 = vector.shape_cast %51 : vector<256x16xf32> to vector<1x256x16xf32>
    tpu.vector_store %arg5[%c5, %c0_23, %c0_24], %54 {strides = array<i32>} : memref<6x256x16xf32, #tpu.memory_space<vmem>>, vector<1x256x16xf32>,
    return
  }
  func.func @transform_0(%arg0: i32) -> (i32, i32, i32) {
    %c0_i32 = arith.constant 0 : i32
    %c0_i32_0 = arith.constant 0 : i32
    %c0_i32_1 = arith.constant 0 : i32
    return %arg0, %c0_i32, %c0_i32_0 : i32, i32, i32
  }
  func.func @transform_1(%arg0: i32) -> (i32, i32, i32) {
    %c0_i32 = arith.constant 0 : i32
    %c0_i32_0 = arith.constant 0 : i32
    %c0_i32_1 = arith.constant 0 : i32
    %c0_i32_2 = arith.constant 0 : i32
    return %c0_i32, %c0_i32_0, %c0_i32_1 : i32, i32, i32
  }
  func.func @transform_2(%arg0: i32) -> (i32, i32, i32) {
    %c0_i32 = arith.constant 0 : i32
    %c0_i32_0 = arith.constant 0 : i32
    %c0_i32_1 = arith.constant 0 : i32
    return %arg0, %c0_i32, %c0_i32_0 : i32, i32, i32
  }
  func.func @transform_3(%arg0: i32) -> (i32, i32, i32) {
    %c0_i32 = arith.constant 0 : i32
    %c0_i32_0 = arith.constant 0 : i32
    %c0_i32_1 = arith.constant 0 : i32
    %c0_i32_2 = arith.constant 0 : i32
    return %c0_i32, %c0_i32_0, %c0_i32_1 : i32, i32, i32
  }
  func.func @transform_4(%arg0: i32) -> (i32, i32, i32) {
    %c0_i32 = arith.constant 0 : i32
    %c0_i32_0 = arith.constant 0 : i32
    %c0_i32_1 = arith.constant 0 : i32
    return %arg0, %c0_i32, %c0_i32_0 : i32, i32, i32
  }
}

</mosaic_0001>

<llo_original>
// kernel: tpu_custom_call.1
$region0: #{tpu_custom_call.1}
  #allocation0 [shape = 'u32[]', space=smem, size = 0x4, offset = 0x4, fixed_abs, tag = 'smem constant byte address 0x4 - core index']
  #allocation1 [shape = 'u32[144,128]{1,0:T(1,128)}', space=vmem, size = 0x12000, scoped, tag = 'internal scratch']
  %s0 = inlined_call_operand.hbm [shape: f32[6,16,256], index: 0, kind: input, shape index: {}]
  %s1 = inlined_call_operand.vmem [shape: f32[1,16,1], index: 1, kind: input, shape index: {}]
  %s2 = inlined_call_operand.vmem [shape: f32[6,16,1], index: 2, kind: input, shape index: {}]
  %s3 = inlined_call_operand.vmem [shape: f32[1,16,256], index: 3, kind: input, shape index: {}]
  %s4 = inlined_call_operand.vmem [shape: f32[6,256,16], index: 4, kind: output, shape index: {}]
  %s5 = sld [smem:[#allocation0]]
  $region30: #{tpu_custom_call.1} parent=0
    _
  %s7 = ssub.s32 1, %s5
  %s8 = scalar_select 0, %s7, %s5
  $region1: #{tpu_custom_call.1} parent=0
    #allocation2 [shape = 'u8[98304]{0}', space=vmem, size = 0x18000, scoped, tag = 'input window, operand 0, single buffered']
    #allocation3 [shape = 's32[1]{0}', space=sflag, size = 0x4, scoped, tag = 'scoped memory for tpu_custom_call.1']
    %9 = vsyncpa [#allocation3], 0
    // Predicated region
    $region2: #{tpu_custom_call.1} parent=1 // pred_check
      _
    $region3: #{tpu_custom_call.1} parent=1 // pred_check_branch
      %11 = sbr.rel (0) target = $region5
    $region4: #{tpu_custom_call.1} parent=1 // pred_region
      %s13 = ssub.s32 3072, 3072
      %14 = vsyncadd [#allocation3], %s13
      %s15 = sshll.u32 [#allocation2], 4
      %s16 = int_to_ptr.vmem [resolvable:$true] %s15
      %21 = dma.hbm_to_vmem [thread:$0]  %s0, 3072, %s16, [#allocation3], 256, 256, 16
    $region5: #{tpu_custom_call.1} parent=1 // pred_fallthru
      _
    // Predicated region
    $region6: #{tpu_custom_call.1} parent=1 // pred_check
      _
    $region7: #{tpu_custom_call.1} parent=1 // pred_check_branch
      %23 = sbr.rel (0) target = $region9
    $region8: #{tpu_custom_call.1} parent=1 // pred_region
      _
    $region9: #{tpu_custom_call.1} parent=1 // pred_fallthru
      _
    // Predicated region
    $region10: #{tpu_custom_call.1} parent=1 // pred_check
      _
    $region11: #{tpu_custom_call.1} parent=1 // pred_check_branch
      %25 = sbr.rel (0) target = $region13
    $region12: #{tpu_custom_call.1} parent=1 // pred_region
      _
    $region13: #{tpu_custom_call.1} parent=1 // pred_fallthru
      _
    // Predicated region
    $region14: #{tpu_custom_call.1} parent=1 // pred_check
      _
    $region15: #{tpu_custom_call.1} parent=1 // pred_check_branch
      %27 = sbr.rel (0) target = $region17
    $region16: #{tpu_custom_call.1} parent=1 // pred_region
      _
    $region17: #{tpu_custom_call.1} parent=1 // pred_fallthru
      _
    // Predicated region
    $region18: #{tpu_custom_call.1} parent=1 // pred_check
      _
    $region19: #{tpu_custom_call.1} parent=1 // pred_check_branch
      %29 = sbr.rel (0) target = $region21
    $region20: #{tpu_custom_call.1} parent=1 // pred_region
      %30 = dma.done [#allocation3], 3072
    $region21: #{tpu_custom_call.1} parent=1 // pred_fallthru
      _
    %v31 = vld [vmem:[#allocation2] sm:$0xff]
    %v32 = vld [vmem:[#allocation2 + $0x8] sm:$0xff]
    %v33 = vld [vmem:[#allocation2 + $0x10] sm:$0xff]
    %v34 = vld [vmem:[#allocation2 + $0x18] sm:$0xff]
    %v35 = vld [vmem:[#allocation2 + $0x20] sm:$0xff]
    %v36 = vld [vmem:[#allocation2 + $0x28] sm:$0xff]
    %v37 = vld [vmem:[#allocation2 + $0x30] sm:$0xff]
    %v38 = vld [vmem:[#allocation2 + $0x38] sm:$0xff]
    %v39 = vld [vmem:[#allocation2 + $0x40] sm:$0xff]
    %v40 = vld [vmem:[#allocation2 + $0x48] sm:$0xff]
    %v41 = vld [vmem:[#allocation2 + $0x50] sm:$0xff]
    %v42 = vld [vmem:[#allocation2 + $0x58] sm:$0xff]
    %v43 = vld [vmem:[#allocation2 + $0x60] sm:$0xff]
    %v44 = vld [vmem:[#allocation2 + $0x68] sm:$0xff]
    %v45 = vld [vmem:[#allocation2 + $0x70] sm:$0xff]
    %v46 = vld [vmem:[#allocation2 + $0x78] sm:$0xff]
    %v47 = vld [vmem:[#allocation2 + $0x80] sm:$0xff]
    %v48 = vld [vmem:[#allocation2 + $0x88] sm:$0xff]
    %v49 = vld [vmem:[#allocation2 + $0x90] sm:$0xff]
    %v50 = vld [vmem:[#allocation2 + $0x98] sm:$0xff]
    %v51 = vld [vmem:[#allocation2 + $0xa0] sm:$0xff]
    %v52 = vld [vmem:[#allocation2 + $0xa8] sm:$0xff]
    %v53 = vld [vmem:[#allocation2 + $0xb0] sm:$0xff]
    %v54 = vld [vmem:[#allocation2 + $0xb8] sm:$0xff]
    %v55 = vld [vmem:[%s1] sm:$0xff]
    %v56 = vld [vmem:[%s1 + $0x8] sm:$0xff]
    %58 = vset.pattern.permute.xlu0 0
    %59 = vperm.xlu0 %58, %v55
    %v60 = vpop.permute.xlu0 %59
    %63 = vset.pattern.permute.xlu0 0
    %64 = vperm.xlu0 %63, %v56
    %v65 = vpop.permute.xlu0 %64
    %v67 = vmul.f32 %v31, %v60
    %v68 = vmul.f32 %v32, %v60
    %v69 = vmul.f32 %v33, %v65
    %v70 = vmul.f32 %v34, %v65
    %v71 = vmul.f32 %v35, %v60
    %v72 = vmul.f32 %v36, %v60
    %v73 = vmul.f32 %v37, %v65
    %v74 = vmul.f32 %v38, %v65
    %v75 = vmul.f32 %v39, %v60
    %v76 = vmul.f32 %v40, %v60
    %v77 = vmul.f32 %v41, %v65
    %v78 = vmul.f32 %v42, %v65
    %v79 = vmul.f32 %v43, %v60
    %v80 = vmul.f32 %v44, %v60
    %v81 = vmul.f32 %v45, %v65
    %v82 = vmul.f32 %v46, %v65
    %v83 = vmul.f32 %v47, %v60
    %v84 = vmul.f32 %v48, %v60
    %v85 = vmul.f32 %v49, %v65
    %v86 = vmul.f32 %v50, %v65
    %v87 = vmul.f32 %v51, %v60
    %v88 = vmul.f32 %v52, %v60
    %v89 = vmul.f32 %v53, %v65
    %v90 = vmul.f32 %v54, %v65
    %v91 = vmul.f32 %v67, 1.442695
    %v92 = vpow.pop %v91
    %v93 = vmul.f32 %v68, 1.442695
    %v94 = vpow.pop %v93
    %v95 = vmul.f32 %v69, 1.442695
    %v96 = vpow.pop %v95
    %v97 = vmul.f32 %v70, 1.442695
    %v98 = vpow.pop %v97
    %v99 = vmul.f32 %v71, 1.442695
    %v100 = vpow.pop %v99
    %v101 = vmul.f32 %v72, 1.442695
    %v102 = vpow.pop %v101
    %v103 = vmul.f32 %v73, 1.442695
    %v104 = vpow.pop %v103
    %v105 = vmul.f32 %v74, 1.442695
    %v106 = vpow.pop %v105
    %v107 = vmul.f32 %v75, 1.442695
    %v108 = vpow.pop %v107
    %v109 = vmul.f32 %v76, 1.442695
    %v110 = vpow.pop %v109
    %v111 = vmul.f32 %v77, 1.442695
    %v112 = vpow.pop %v111
    %v113 = vmul.f32 %v78, 1.442695
    %v114 = vpow.pop %v113
    %v115 = vmul.f32 %v79, 1.442695
    %v116 = vpow.pop %v115
    %v117 = vmul.f32 %v80, 1.442695
    %v118 = vpow.pop %v117
    %v119 = vmul.f32 %v81, 1.442695
    %v120 = vpow.pop %v119
    %v121 = vmul.f32 %v82, 1.442695
    %v122 = vpow.pop %v121
    %v123 = vmul.f32 %v83, 1.442695
    %v124 = vpow.pop %v123
    %v125 = vmul.f32 %v84, 1.442695
    %v126 = vpow.pop %v125
    %v127 = vmul.f32 %v85, 1.442695
    %v128 = vpow.pop %v127
    %v129 = vmul.f32 %v86, 1.442695
    %v130 = vpow.pop %v129
    %v131 = vmul.f32 %v87, 1.442695
    %v132 = vpow.pop %v131
    %v133 = vmul.f32 %v88, 1.442695
    %v134 = vpow.pop %v133
    %v135 = vmul.f32 %v89, 1.442695
    %v136 = vpow.pop %v135
    %v137 = vmul.f32 %v90, 1.442695
    %v138 = vpow.pop %v137
    %v139 = vadd.f32 %v92, 1.0
    %v140 = vadd.f32 %v94, 1.0
    %v141 = vadd.f32 %v96, 1.0
    %v142 = vadd.f32 %v98, 1.0
    %v143 = vadd.f32 %v100, 1.0
    %v144 = vadd.f32 %v102, 1.0
    %v145 = vadd.f32 %v104, 1.0
    %v146 = vadd.f32 %v106, 1.0
    %v147 = vadd.f32 %v108, 1.0
    %v148 = vadd.f32 %v110, 1.0
    %v149 = vadd.f32 %v112, 1.0
    %v150 = vadd.f32 %v114, 1.0
    %v151 = vadd.f32 %v116, 1.0
    %v152 = vadd.f32 %v118, 1.0
    %v153 = vadd.f32 %v120, 1.0
    %v154 = vadd.f32 %v122, 1.0
    %v155 = vadd.f32 %v124, 1.0
    %v156 = vadd.f32 %v126, 1.0
    %v157 = vadd.f32 %v128, 1.0
    %v158 = vadd.f32 %v130, 1.0
    %v159 = vadd.f32 %v132, 1.0
    %v160 = vadd.f32 %v134, 1.0
    %v161 = vadd.f32 %v136, 1.0
    %v162 = vadd.f32 %v138, 1.0
    %v163 = vrcp.pop %v139
    %v164 = vrcp.pop %v140
    %v165 = vrcp.pop %v141
    %v166 = vrcp.pop %v142
    %v167 = vrcp.pop %v143
    %v168 = vrcp.pop %v144
    %v169 = vrcp.pop %v145
    %v170 = vrcp.pop %v146
    %v171 = vrcp.pop %v147
    %v172 = vrcp.pop %v148
    %v173 = vrcp.pop %v149
    %v174 = vrcp.pop %v150
    %v175 = vrcp.pop %v151
    %v176 = vrcp.pop %v152
    %v177 = vrcp.pop %v153
    %v178 = vrcp.pop %v154
    %v179 = vrcp.pop %v155
    %v180 = vrcp.pop %v156
    %v181 = vrcp.pop %v157
    %v182 = vrcp.pop %v158
    %v183 = vrcp.pop %v159
    %v184 = vrcp.pop %v160
    %v185 = vrcp.pop %v161
    %v186 = vrcp.pop %v162
    %vm187 = vcmp.gt.f32.partialorder %v55, 0.0
    %vm188 = vcmp.gt.f32.partialorder %v56, 0.0
    %v189 = vsel %vm187, 1, 0
    %v190 = vsel %vm188, 1, 0
    %191 = vset.pattern.permute.xlu0 0
    %192 = vperm.xlu0 %191, %v189
    %v193 = vpop.permute.xlu0 %192
    %194 = vset.pattern.permute.xlu0 0
    %195 = vperm.xlu0 %194, %v190
    %v196 = vpop.permute.xlu0 %195
    %vm197 = vcmp.eq.s32.totalorder %v193, 1
    %vm198 = vcmp.eq.s32.totalorder %v196, 1
    %v199 = vsel %vm197, %v92, %v163
    %v200 = vsel %vm197, %v94, %v164
    %v201 = vsel %vm198, %v96, %v165
    %v202 = vsel %vm198, %v98, %v166
    %v203 = vsel %vm197, %v100, %v167
    %v204 = vsel %vm197, %v102, %v168
    %v205 = vsel %vm198, %v104, %v169
    %v206 = vsel %vm198, %v106, %v170
    %v207 = vsel %vm197, %v108, %v171
    %v208 = vsel %vm197, %v110, %v172
    %v209 = vsel %vm198, %v112, %v173
    %v210 = vsel %vm198, %v114, %v174
    %v211 = vsel %vm197, %v116, %v175
    %v212 = vsel %vm197, %v118, %v176
    %v213 = vsel %vm198, %v120, %v177
    %v214 = vsel %vm198, %v122, %v178
    %v215 = vsel %vm197, %v124, %v179
    %v216 = vsel %vm197, %v126, %v180
    %v217 = vsel %vm198, %v128, %v181
    %v218 = vsel %vm198, %v130, %v182
    %v219 = vsel %vm197, %v132, %v183
    %v220 = vsel %vm197, %v134, %v184
    %v221 = vsel %vm198, %v136, %v185
    %v222 = vsel %vm198, %v138, %v186
    %v223 = vld [vmem:[%s2] sm:$0xff]
    %v224 = vld [vmem:[%s2 + $0x8] sm:$0xff]
    %v225 = vld [vmem:[%s2 + $0x10] sm:$0xff]
    %v226 = vld [vmem:[%s2 + $0x18] sm:$0xff]
    %v227 = vld [vmem:[%s2 + $0x20] sm:$0xff]
    %v228 = vld [vmem:[%s2 + $0x28] sm:$0xff]
    %v229 = vld [vmem:[%s2 + $0x30] sm:$0xff]
    %v230 = vld [vmem:[%s2 + $0x38] sm:$0xff]
    %v231 = vld [vmem:[%s2 + $0x40] sm:$0xff]
    %v232 = vld [vmem:[%s2 + $0x48] sm:$0xff]
    %v233 = vld [vmem:[%s2 + $0x50] sm:$0xff]
    %v234 = vld [vmem:[%s2 + $0x58] sm:$0xff]
    %236 = vset.pattern.permute.xlu0 0
    %237 = vperm.xlu0 %236, %v223
    %v238 = vpop.permute.xlu0 %237
    %241 = vset.pattern.permute.xlu0 0
    %242 = vperm.xlu0 %241, %v224
    %v243 = vpop.permute.xlu0 %242
    %246 = vset.pattern.permute.xlu0 0
    %247 = vperm.xlu0 %246, %v225
    %v248 = vpop.permute.xlu0 %247
    %251 = vset.pattern.permute.xlu0 0
    %252 = vperm.xlu0 %251, %v226
    %v253 = vpop.permute.xlu0 %252
    %256 = vset.pattern.permute.xlu0 0
    %257 = vperm.xlu0 %256, %v227
    %v258 = vpop.permute.xlu0 %257
    %261 = vset.pattern.permute.xlu0 0
    %262 = vperm.xlu0 %261, %v228
    %v263 = vpop.permute.xlu0 %262
    %266 = vset.pattern.permute.xlu0 0
    %267 = vperm.xlu0 %266, %v229
    %v268 = vpop.permute.xlu0 %267
    %271 = vset.pattern.permute.xlu0 0
    %272 = vperm.xlu0 %271, %v230
    %v273 = vpop.permute.xlu0 %272
    %276 = vset.pattern.permute.xlu0 0
    %277 = vperm.xlu0 %276, %v231
    %v278 = vpop.permute.xlu0 %277
    %281 = vset.pattern.permute.xlu0 0
    %282 = vperm.xlu0 %281, %v232
    %v283 = vpop.permute.xlu0 %282
    %286 = vset.pattern.permute.xlu0 0
    %287 = vperm.xlu0 %286, %v233
    %v288 = vpop.permute.xlu0 %287
    %291 = vset.pattern.permute.xlu0 0
    %292 = vperm.xlu0 %291, %v234
    %v293 = vpop.permute.xlu0 %292
    %v295 = vmul.f32 %v199, %v238
    %v296 = vmul.f32 %v200, %v238
    %v297 = vmul.f32 %v201, %v243
    %v298 = vmul.f32 %v202, %v243
    %v299 = vmul.f32 %v203, %v248
    %v300 = vmul.f32 %v204, %v248
    %v301 = vmul.f32 %v205, %v253
    %v302 = vmul.f32 %v206, %v253
    %v303 = vmul.f32 %v207, %v258
    %v304 = vmul.f32 %v208, %v258
    %v305 = vmul.f32 %v209, %v263
    %v306 = vmul.f32 %v210, %v263
    %v307 = vmul.f32 %v211, %v268
    %v308 = vmul.f32 %v212, %v268
    %v309 = vmul.f32 %v213, %v273
    %v310 = vmul.f32 %v214, %v273
    %v311 = vmul.f32 %v215, %v278
    %v312 = vmul.f32 %v216, %v278
    %v313 = vmul.f32 %v217, %v283
    %v314 = vmul.f32 %v218, %v283
    %v315 = vmul.f32 %v219, %v288
    %v316 = vmul.f32 %v220, %v288
    %v317 = vmul.f32 %v221, %v293
    %v318 = vmul.f32 %v222, %v293
    %v319 = vld [vmem:[%s3] sm:$0xff]
    %v320 = vld [vmem:[%s3 + $0x8] sm:$0xff]
    %v321 = vld [vmem:[%s3 + $0x10] sm:$0xff]
    %v322 = vld [vmem:[%s3 + $0x18] sm:$0xff]
    %v323 = vadd.f32 %v295, %v319
    %v324 = vadd.f32 %v296, %v320
    %v325 = vadd.f32 %v297, %v321
    %v326 = vadd.f32 %v298, %v322
    %v327 = vadd.f32 %v299, %v319
    %v328 = vadd.f32 %v300, %v320
    %v329 = vadd.f32 %v301, %v321
    %v330 = vadd.f32 %v302, %v322
    %v331 = vadd.f32 %v303, %v319
    %v332 = vadd.f32 %v304, %v320
    %v333 = vadd.f32 %v305, %v321
    %v334 = vadd.f32 %v306, %v322
    %v335 = vadd.f32 %v307, %v319
    %v336 = vadd.f32 %v308, %v320
    %v337 = vadd.f32 %v309, %v321
    %v338 = vadd.f32 %v310, %v322
    %v339 = vadd.f32 %v311, %v319
    %v340 = vadd.f32 %v312, %v320
    %v341 = vadd.f32 %v313, %v321
    %v342 = vadd.f32 %v314, %v322
    %v343 = vadd.f32 %v315, %v319
    %v344 = vadd.f32 %v316, %v320
    %v345 = vadd.f32 %v317, %v321
    %v346 = vadd.f32 %v318, %v322
    %347 = vxpose.xlu0.b32.start [1/16] %v323, 128
    %348 = vxpose.xlu0.b32.cont [2/16] %v325, 128
    %349 = vxpose.xlu0.b32.cont [3/16] 0.0, 128
    %350 = vxpose.xlu0.b32.cont [4/16] 0.0, 128
    %351 = vxpose.xlu0.b32.cont [5/16] 0.0, 128
    %352 = vxpose.xlu0.b32.cont [6/16] 0.0, 128
    %353 = vxpose.xlu0.b32.cont [7/16] 0.0, 128
    %354 = vxpose.xlu0.b32.cont [8/16] 0.0, 128
    %355 = vxpose.xlu0.b32.cont [9/16] 0.0, 128
    %356 = vxpose.xlu0.b32.cont [10/16] 0.0, 128
    %357 = vxpose.xlu0.b32.cont [11/16] 0.0, 128
    %358 = vxpose.xlu0.b32.cont [12/16] 0.0, 128
    %359 = vxpose.xlu0.b32.cont [13/16] 0.0, 128
    %360 = vxpose.xlu0.b32.cont [14/16] 0.0, 128
    %361 = vxpose.xlu0.b32.cont [15/16] 0.0, 128
    %362 = vxpose.xlu0.b32.end [16/16] 0.0, 128
    %v363 = vpop.trf.xlu0
    %v364 = vpop.trf.xlu0
    %v365 = vpop.trf.xlu0
    %v366 = vpop.trf.xlu0
    %v367 = vpop.trf.xlu0
    %v368 = vpop.trf.xlu0
    %v369 = vpop.trf.xlu0
    %v370 = vpop.trf.xlu0
    %v371 = vpop.trf.xlu0
    %v372 = vpop.trf.xlu0
    %v373 = vpop.trf.xlu0
    %v374 = vpop.trf.xlu0
    %v375 = vpop.trf.xlu0
    %v376 = vpop.trf.xlu0
    %v377 = vpop.trf.xlu0
    %v378 = vpop.trf.xlu0
    %379 = vxpose.xlu0.b32.start [1/16] %v324, 128
    %380 = vxpose.xlu0.b32.cont [2/16] %v326, 128
    %381 = vxpose.xlu0.b32.cont [3/16] 0.0, 128
    %382 = vxpose.xlu0.b32.cont [4/16] 0.0, 128
    %383 = vxpose.xlu0.b32.cont [5/16] 0.0, 128
    %384 = vxpose.xlu0.b32.cont [6/16] 0.0, 128
    %385 = vxpose.xlu0.b32.cont [7/16] 0.0, 128
    %386 = vxpose.xlu0.b32.cont [8/16] 0.0, 128
    %387 = vxpose.xlu0.b32.cont [9/16] 0.0, 128
    %388 = vxpose.xlu0.b32.cont [10/16] 0.0, 128
    %389 = vxpose.xlu0.b32.cont [11/16] 0.0, 128
    %390 = vxpose.xlu0.b32.cont [12/16] 0.0, 128
    %391 = vxpose.xlu0.b32.cont [13/16] 0.0, 128
    %392 = vxpose.xlu0.b32.cont [14/16] 0.0, 128
    %393 = vxpose.xlu0.b32.cont [15/16] 0.0, 128
    %394 = vxpose.xlu0.b32.end [16/16] 0.0, 128
    %v395 = vpop.trf.xlu0
    %v396 = vpop.trf.xlu0
    %v397 = vpop.trf.xlu0
    %v398 = vpop.trf.xlu0
    %v399 = vpop.trf.xlu0
    %v400 = vpop.trf.xlu0
    %v401 = vpop.trf.xlu0
    %v402 = vpop.trf.xlu0
    %v403 = vpop.trf.xlu0
    %v404 = vpop.trf.xlu0
    %v405 = vpop.trf.xlu0
    %v406 = vpop.trf.xlu0
    %v407 = vpop.trf.xlu0
    %v408 = vpop.trf.xlu0
    %v409 = vpop.trf.xlu0
    %v410 = vpop.trf.xlu0
    %vm411 = vcmask 130048
    %412 = vst.msk [vmem:[%s4] sm:$0xff] %vm411, %v363
    %413 = vst.msk [vmem:[%s4 + $0x8] sm:$0xff] %vm411, %v364
    %414 = vst.msk [vmem:[%s4 + $0x10] sm:$0xff] %vm411, %v365
    %415 = vst.msk [vmem:[%s4 + $0x18] sm:$0xff] %vm411, %v366
    %416 = vst.msk [vmem:[%s4 + $0x20] sm:$0xff] %vm411, %v367
    %417 = vst.msk [vmem:[%s4 + $0x28] sm:$0xff] %vm411, %v368
    %418 = vst.msk [vmem:[%s4 + $0x30] sm:$0xff] %vm411, %v369
    %419 = vst.msk [vmem:[%s4 + $0x38] sm:$0xff] %vm411, %v370
    %420 = vst.msk [vmem:[%s4 + $0x40] sm:$0xff] %vm411, %v371
    %421 = vst.msk [vmem:[%s4 + $0x48] sm:$0xff] %vm411, %v372
    %422 = vst.msk [vmem:[%s4 + $0x50] sm:$0xff] %vm411, %v373
    %423 = vst.msk [vmem:[%s4 + $0x58] sm:$0xff] %vm411, %v374
    %424 = vst.msk [vmem:[%s4 + $0x60] sm:$0xff] %vm411, %v375
    %425 = vst.msk [vmem:[%s4 + $0x68] sm:$0xff] %vm411, %v376
    %426 = vst.msk [vmem:[%s4 + $0x70] sm:$0xff] %vm411, %v377
    %427 = vst.msk [vmem:[%s4 + $0x78] sm:$0xff] %vm411, %v378
    %428 = vst.msk [vmem:[%s4 + $0x80] sm:$0xff] %vm411, %v395
    %429 = vst.msk [vmem:[%s4 + $0x88] sm:$0xff] %vm411, %v396
    %430 = vst.msk [vmem:[%s4 + $0x90] sm:$0xff] %vm411, %v397
    %431 = vst.msk [vmem:[%s4 + $0x98] sm:$0xff] %vm411, %v398
    %432 = vst.msk [vmem:[%s4 + $0xa0] sm:$0xff] %vm411, %v399
    %433 = vst.msk [vmem:[%s4 + $0xa8] sm:$0xff] %vm411, %v400
    %434 = vst.msk [vmem:[%s4 + $0xb0] sm:$0xff] %vm411, %v401
    %435 = vst.msk [vmem:[%s4 + $0xb8] sm:$0xff] %vm411, %v402
    %436 = vst.msk [vmem:[%s4 + $0xc0] sm:$0xff] %vm411, %v403
    %437 = vst.msk [vmem:[%s4 + $0xc8] sm:$0xff] %vm411, %v404
    %438 = vst.msk [vmem:[%s4 + $0xd0] sm:$0xff] %vm411, %v405
    %439 = vst.msk [vmem:[%s4 + $0xd8] sm:$0xff] %vm411, %v406
    %440 = vst.msk [vmem:[%s4 + $0xe0] sm:$0xff] %vm411, %v407
    %441 = vst.msk [vmem:[%s4 + $0xe8] sm:$0xff] %vm411, %v408
    %442 = vst.msk [vmem:[%s4 + $0xf0] sm:$0xff] %vm411, %v409
    %443 = vst.msk [vmem:[%s4 + $0xf8] sm:$0xff] %vm411, %v410
    %444 = vxpose.xlu0.b32.start [1/16] %v327, 128
    %445 = vxpose.xlu0.b32.cont [2/16] %v329, 128
    %446 = vxpose.xlu0.b32.cont [3/16] 0.0, 128
    %447 = vxpose.xlu0.b32.cont [4/16] 0.0, 128
    %448 = vxpose.xlu0.b32.cont [5/16] 0.0, 128
    %449 = vxpose.xlu0.b32.cont [6/16] 0.0, 128
    %450 = vxpose.xlu0.b32.cont [7/16] 0.0, 128
    %451 = vxpose.xlu0.b32.cont [8/16] 0.0, 128
    %452 = vxpose.xlu0.b32.cont [9/16] 0.0, 128
    %453 = vxpose.xlu0.b32.cont [10/16] 0.0, 128
    %454 = vxpose.xlu0.b32.cont [11/16] 0.0, 128
    %455 = vxpose.xlu0.b32.cont [12/16] 0.0, 128
    %456 = vxpose.xlu0.b32.cont [13/16] 0.0, 128
    %457 = vxpose.xlu0.b32.cont [14/16] 0.0, 128
    %458 = vxpose.xlu0.b32.cont [15/16] 0.0, 128
    %459 = vxpose.xlu0.b32.end [16/16] 0.0, 128
    %v460 = vpop.trf.xlu0
    %v461 = vpop.trf.xlu0
    %v462 = vpop.trf.xlu0
    %v463 = vpop.trf.xlu0
    %v464 = vpop.trf.xlu0
    %v465 = vpop.trf.xlu0
    %v466 = vpop.trf.xlu0
    %v467 = vpop.trf.xlu0
    %v468 = vpop.trf.xlu0
    %v469 = vpop.trf.xlu0
    %v470 = vpop.trf.xlu0
    %v471 = vpop.trf.xlu0
    %v472 = vpop.trf.xlu0
    %v473 = vpop.trf.xlu0
    %v474 = vpop.trf.xlu0
    %v475 = vpop.trf.xlu0
    %476 = vxpose.xlu0.b32.start [1/16] %v328, 128
    %477 = vxpose.xlu0.b32.cont [2/16] %v330, 128
    %478 = vxpose.xlu0.b32.cont [3/16] 0.0, 128
    %479 = vxpose.xlu0.b32.cont [4/16] 0.0, 128
    %480 = vxpose.xlu0.b32.cont [5/16] 0.0, 128
    %481 = vxpose.xlu0.b32.cont [6/16] 0.0, 128
    %482 = vxpose.xlu0.b32.cont [7/16] 0.0, 128
    %483 = vxpose.xlu0.b32.cont [8/16] 0.0, 128
    %484 = vxpose.xlu0.b32.cont [9/16] 0.0, 128
    %485 = vxpose.xlu0.b32.cont [10/16] 0.0, 128
    %486 = vxpose.xlu0.b32.cont [11/16] 0.0, 128
    %487 = vxpose.xlu0.b32.cont [12/16] 0.0, 128
    %488 = vxpose.xlu0.b32.cont [13/16] 0.0, 128
    %489 = vxpose.xlu0.b32.cont [14/16] 0.0, 128
    %490 = vxpose.xlu0.b32.cont [15/16] 0.0, 128
    %491 = vxpose.xlu0.b32.end [16/16] 0.0, 128
    %v492 = vpop.trf.xlu0
    %v493 = vpop.trf.xlu0
    %v494 = vpop.trf.xlu0
    %v495 = vpop.trf.xlu0
    %v496 = vpop.trf.xlu0
    %v497 = vpop.trf.xlu0
    %v498 = vpop.trf.xlu0
    %v499 = vpop.trf.xlu0
    %v500 = vpop.trf.xlu0
    %v501 = vpop.trf.xlu0
    %v502 = vpop.trf.xlu0
    %v503 = vpop.trf.xlu0
    %v504 = vpop.trf.xlu0
    %v505 = vpop.trf.xlu0
    %v506 = vpop.trf.xlu0
    %v507 = vpop.trf.xlu0
    %s508 = scalar_lea.vmem %s4, 256
    %509 = vst.msk [vmem:[%s508] sm:$0xff] %vm411, %v460
    %510 = vst.msk [vmem:[%s508 + $0x8] sm:$0xff] %vm411, %v461
    %511 = vst.msk [vmem:[%s508 + $0x10] sm:$0xff] %vm411, %v462
    %512 = vst.msk [vmem:[%s508 + $0x18] sm:$0xff] %vm411, %v463
    %513 = vst.msk [vmem:[%s508 + $0x20] sm:$0xff] %vm411, %v464
    %514 = vst.msk [vmem:[%s508 + $0x28] sm:$0xff] %vm411, %v465
    %515 = vst.msk [vmem:[%s508 + $0x30] sm:$0xff] %vm411, %v466
    %516 = vst.msk [vmem:[%s508 + $0x38] sm:$0xff] %vm411, %v467
    %517 = vst.msk [vmem:[%s508 + $0x40] sm:$0xff] %vm411, %v468
    %518 = vst.msk [vmem:[%s508 + $0x48] sm:$0xff] %vm411, %v469
    %519 = vst.msk [vmem:[%s508 + $0x50] sm:$0xff] %vm411, %v470
    %520 = vst.msk [vmem:[%s508 + $0x58] sm:$0xff] %vm411, %v471
    %521 = vst.msk [vmem:[%s508 + $0x60] sm:$0xff] %vm411, %v472
    %522 = vst.msk [vmem:[%s508 + $0x68] sm:$0xff] %vm411, %v473
    %523 = vst.msk [vmem:[%s508 + $0x70] sm:$0xff] %vm411, %v474
    %524 = vst.msk [vmem:[%s508 + $0x78] sm:$0xff] %vm411, %v475
    %525 = vst.msk [vmem:[%s508 + $0x80] sm:$0xff] %vm411, %v492
    %526 = vst.msk [vmem:[%s508 + $0x88] sm:$0xff] %vm411, %v493
    %527 = vst.msk [vmem:[%s508 + $0x90] sm:$0xff] %vm411, %v494
    %528 = vst.msk [vmem:[%s508 + $0x98] sm:$0xff] %vm411, %v495
    %529 = vst.msk [vmem:[%s508 + $0xa0] sm:$0xff] %vm411, %v496
    %530 = vst.msk [vmem:[%s508 + $0xa8] sm:$0xff] %vm411, %v497
    %531 = vst.msk [vmem:[%s508 + $0xb0] sm:$0xff] %vm411, %v498
    %532 = vst.msk [vmem:[%s508 + $0xb8] sm:$0xff] %vm411, %v499
    %533 = vst.msk [vmem:[%s508 + $0xc0] sm:$0xff] %vm411, %v500
    %534 = vst.msk [vmem:[%s508 + $0xc8] sm:$0xff] %vm411, %v501
    %535 = vst.msk [vmem:[%s508 + $0xd0] sm:$0xff] %vm411, %v502
    %536 = vst.msk [vmem:[%s508 + $0xd8] sm:$0xff] %vm411, %v503
    %537 = vst.msk [vmem:[%s508 + $0xe0] sm:$0xff] %vm411, %v504
    %538 = vst.msk [vmem:[%s508 + $0xe8] sm:$0xff] %vm411, %v505
    %539 = vst.msk [vmem:[%s508 + $0xf0] sm:$0xff] %vm411, %v506
    %540 = vst.msk [vmem:[%s508 + $0xf8] sm:$0xff] %vm411, %v507
    %541 = vxpose.xlu0.b32.start [1/16] %v331, 128
    %542 = vxpose.xlu0.b32.cont [2/16] %v333, 128
    %543 = vxpose.xlu0.b32.cont [3/16] 0.0, 128
    %544 = vxpose.xlu0.b32.cont [4/16] 0.0, 128
    %545 = vxpose.xlu0.b32.cont [5/16] 0.0, 128
    %546 = vxpose.xlu0.b32.cont [6/16] 0.0, 128
    %547 = vxpose.xlu0.b32.cont [7/16] 0.0, 128
    %548 = vxpose.xlu0.b32.cont [8/16] 0.0, 128
    %549 = vxpose.xlu0.b32.cont [9/16] 0.0, 128
    %550 = vxpose.xlu0.b32.cont [10/16] 0.0, 128
    %551 = vxpose.xlu0.b32.cont [11/16] 0.0, 128
    %552 = vxpose.xlu0.b32.cont [12/16] 0.0, 128
    %553 = vxpose.xlu0.b32.cont [13/16] 0.0, 128
    %554 = vxpose.xlu0.b32.cont [14/16] 0.0, 128
    %555 = vxpose.xlu0.b32.cont [15/16] 0.0, 128
    %556 = vxpose.xlu0.b32.end [16/16] 0.0, 128
    %v557 = vpop.trf.xlu0
    %v558 = vpop.trf.xlu0
    %v559 = vpop.trf.xlu0
    %v560 = vpop.trf.xlu0
    %v561 = vpop.trf.xlu0
    %v562 = vpop.trf.xlu0
    %v563 = vpop.trf.xlu0
    %v564 = vpop.trf.xlu0
    %v565 = vpop.trf.xlu0
    %v566 = vpop.trf.xlu0
    %v567 = vpop.trf.xlu0
    %v568 = vpop.trf.xlu0
    %v569 = vpop.trf.xlu0
    %v570 = vpop.trf.xlu0
    %v571 = vpop.trf.xlu0
    %v572 = vpop.trf.xlu0
    %573 = vxpose.xlu0.b32.start [1/16] %v332, 128
    %574 = vxpose.xlu0.b32.cont [2/16] %v334, 128
    %575 = vxpose.xlu0.b32.cont [3/16] 0.0, 128
    %576 = vxpose.xlu0.b32.cont [4/16] 0.0, 128
    %577 = vxpose.xlu0.b32.cont [5/16] 0.0, 128
    %578 = vxpose.xlu0.b32.cont [6/16] 0.0, 128
    %579 = vxpose.xlu0.b32.cont [7/16] 0.0, 128
    %580 = vxpose.xlu0.b32.cont [8/16] 0.0, 128
    %581 = vxpose.xlu0.b32.cont [9/16] 0.0, 128
    %582 = vxpose.xlu0.b32.cont [10/16] 0.0, 128
    %583 = vxpose.xlu0.b32.cont [11/16] 0.0, 128
    %584 = vxpose.xlu0.b32.cont [12/16] 0.0, 128
    %585 = vxpose.xlu0.b32.cont [13/16] 0.0, 128
    %586 = vxpose.xlu0.b32.cont [14/16] 0.0, 128
    %587 = vxpose.xlu0.b32.cont [15/16] 0.0, 128
    %588 = vxpose.xlu0.b32.end [16/16] 0.0, 128
    %v589 = vpop.trf.xlu0
    %v590 = vpop.trf.xlu0
    %v591 = vpop.trf.xlu0
    %v592 = vpop.trf.xlu0
    %v593 = vpop.trf.xlu0
    %v594 = vpop.trf.xlu0
    %v595 = vpop.trf.xlu0
    %v596 = vpop.trf.xlu0
    %v597 = vpop.trf.xlu0
    %v598 = vpop.trf.xlu0
    %v599 = vpop.trf.xlu0
    %v600 = vpop.trf.xlu0
    %v601 = vpop.trf.xlu0
    %v602 = vpop.trf.xlu0
    %v603 = vpop.trf.xlu0
    %v604 = vpop.trf.xlu0
    %s605 = scalar_lea.vmem %s4, 512
    %606 = vst.msk [vmem:[%s605] sm:$0xff] %vm411, %v557
    %607 = vst.msk [vmem:[%s605 + $0x8] sm:$0xff] %vm411, %v558
    %608 = vst.msk [vmem:[%s605 + $0x10] sm:$0xff] %vm411, %v559
    %609 = vst.msk [vmem:[%s605 + $0x18] sm:$0xff] %vm411, %v560
    %610 = vst.msk [vmem:[%s605 + $0x20] sm:$0xff] %vm411, %v561
    %611 = vst.msk [vmem:[%s605 + $0x28] sm:$0xff] %vm411, %v562
    %612 = vst.msk [vmem:[%s605 + $0x30] sm:$0xff] %vm411, %v563
    %613 = vst.msk [vmem:[%s605 + $0x38] sm:$0xff] %vm411, %v564
    %614 = vst.msk [vmem:[%s605 + $0x40] sm:$0xff] %vm411, %v565
    %615 = vst.msk [vmem:[%s605 + $0x48] sm:$0xff] %vm411, %v566
    %616 = vst.msk [vmem:[%s605 + $0x50] sm:$0xff] %vm411, %v567
    %617 = vst.msk [vmem:[%s605 + $0x58] sm:$0xff] %vm411, %v568
    %618 = vst.msk [vmem:[%s605 + $0x60] sm:$0xff] %vm411, %v569
    %619 = vst.msk [vmem:[%s605 + $0x68] sm:$0xff] %vm411, %v570
    %620 = vst.msk [vmem:[%s605 + $0x70] sm:$0xff] %vm411, %v571
    %621 = vst.msk [vmem:[%s605 + $0x78] sm:$0xff] %vm411, %v572
    %622 = vst.msk [vmem:[%s605 + $0x80] sm:$0xff] %vm411, %v589
    %623 = vst.msk [vmem:[%s605 + $0x88] sm:$0xff] %vm411, %v590
    %624 = vst.msk [vmem:[%s605 + $0x90] sm:$0xff] %vm411, %v591
    %625 = vst.msk [vmem:[%s605 + $0x98] sm:$0xff] %vm411, %v592
    %626 = vst.msk [vmem:[%s605 + $0xa0] sm:$0xff] %vm411, %v593
    %627 = vst.msk [vmem:[%s605 + $0xa8] sm:$0xff] %vm411, %v594
    %628 = vst.msk [vmem:[%s605 + $0xb0] sm:$0xff] %vm411, %v595
    %629 = vst.msk [vmem:[%s605 + $0xb8] sm:$0xff] %vm411, %v596
    %630 = vst.msk [vmem:[%s605 + $0xc0] sm:$0xff] %vm411, %v597
    %631 = vst.msk [vmem:[%s605 + $0xc8] sm:$0xff] %vm411, %v598
    %632 = vst.msk [vmem:[%s605 + $0xd0] sm:$0xff] %vm411, %v599
    %633 = vst.msk [vmem:[%s605 + $0xd8] sm:$0xff] %vm411, %v600
    %634 = vst.msk [vmem:[%s605 + $0xe0] sm:$0xff] %vm411, %v601
    %635 = vst.msk [vmem:[%s605 + $0xe8] sm:$0xff] %vm411, %v602
    %636 = vst.msk [vmem:[%s605 + $0xf0] sm:$0xff] %vm411, %v603
    %637 = vst.msk [vmem:[%s605 + $0xf8] sm:$0xff] %vm411, %v604
    %638 = vxpose.xlu0.b32.start [1/16] %v335, 128
    %639 = vxpose.xlu0.b32.cont [2/16] %v337, 128
    %640 = vxpose.xlu0.b32.cont [3/16] 0.0, 128
    %641 = vxpose.xlu0.b32.cont [4/16] 0.0, 128
    %642 = vxpose.xlu0.b32.cont [5/16] 0.0, 128
    %643 = vxpose.xlu0.b32.cont [6/16] 0.0, 128
    %644 = vxpose.xlu0.b32.cont [7/16] 0.0, 128
    %645 = vxpose.xlu0.b32.cont [8/16] 0.0, 128
    %646 = vxpose.xlu0.b32.cont [9/16] 0.0, 128
    %647 = vxpose.xlu0.b32.cont [10/16] 0.0, 128
    %648 = vxpose.xlu0.b32.cont [11/16] 0.0, 128
    %649 = vxpose.xlu0.b32.cont [12/16] 0.0, 128
    %650 = vxpose.xlu0.b32.cont [13/16] 0.0, 128
    %651 = vxpose.xlu0.b32.cont [14/16] 0.0, 128
    %652 = vxpose.xlu0.b32.cont [15/16] 0.0, 128
    %653 = vxpose.xlu0.b32.end [16/16] 0.0, 128
    %v654 = vpop.trf.xlu0
    %v655 = vpop.trf.xlu0
    %v656 = vpop.trf.xlu0
    %v657 = vpop.trf.xlu0
    %v658 = vpop.trf.xlu0
    %v659 = vpop.trf.xlu0
    %v660 = vpop.trf.xlu0
    %v661 = vpop.trf.xlu0
    %v662 = vpop.trf.xlu0
    %v663 = vpop.trf.xlu0
    %v664 = vpop.trf.xlu0
    %v665 = vpop.trf.xlu0
    %v666 = vpop.trf.xlu0
    %v667 = vpop.trf.xlu0
    %v668 = vpop.trf.xlu0
    %v669 = vpop.trf.xlu0
    %670 = vxpose.xlu0.b32.start [1/16] %v336, 128
    %671 = vxpose.xlu0.b32.cont [2/16] %v338, 128
    %672 = vxpose.xlu0.b32.cont [3/16] 0.0, 128
    %673 = vxpose.xlu0.b32.cont [4/16] 0.0, 128
    %674 = vxpose.xlu0.b32.cont [5/16] 0.0, 128
    %675 = vxpose.xlu0.b32.cont [6/16] 0.0, 128
    %676 = vxpose.xlu0.b32.cont [7/16] 0.0, 128
    %677 = vxpose.xlu0.b32.cont [8/16] 0.0, 128
    %678 = vxpose.xlu0.b32.cont [9/16] 0.0, 128
    %679 = vxpose.xlu0.b32.cont [10/16] 0.0, 128
    %680 = vxpose.xlu0.b32.cont [11/16] 0.0, 128
    %681 = vxpose.xlu0.b32.cont [12/16] 0.0, 128
    %682 = vxpose.xlu0.b32.cont [13/16] 0.0, 128
    %683 = vxpose.xlu0.b32.cont [14/16] 0.0, 128
    %684 = vxpose.xlu0.b32.cont [15/16] 0.0, 128
    %685 = vxpose.xlu0.b32.end [16/16] 0.0, 128
    %v686 = vpop.trf.xlu0
    %v687 = vpop.trf.xlu0
    %v688 = vpop.trf.xlu0
    %v689 = vpop.trf.xlu0
    %v690 = vpop.trf.xlu0
    %v691 = vpop.trf.xlu0
    %v692 = vpop.trf.xlu0
    %v693 = vpop.trf.xlu0
    %v694 = vpop.trf.xlu0
    %v695 = vpop.trf.xlu0
    %v696 = vpop.trf.xlu0
    %v697 = vpop.trf.xlu0
    %v698 = vpop.trf.xlu0
    %v699 = vpop.trf.xlu0
    %v700 = vpop.trf.xlu0
    %v701 = vpop.trf.xlu0
    %s702 = scalar_lea.vmem %s4, 768
    %703 = vst.msk [vmem:[%s702] sm:$0xff] %vm411, %v654
    %704 = vst.msk [vmem:[%s702 + $0x8] sm:$0xff] %vm411, %v655
    %705 = vst.msk [vmem:[%s702 + $0x10] sm:$0xff] %vm411, %v656
    %706 = vst.msk [vmem:[%s702 + $0x18] sm:$0xff] %vm411, %v657
    %707 = vst.msk [vmem:[%s702 + $0x20] sm:$0xff] %vm411, %v658
    %708 = vst.msk [vmem:[%s702 + $0x28] sm:$0xff] %vm411, %v659
    %709 = vst.msk [vmem:[%s702 + $0x30] sm:$0xff] %vm411, %v660
    %710 = vst.msk [vmem:[%s702 + $0x38] sm:$0xff] %vm411, %v661
    %711 = vst.msk [vmem:[%s702 + $0x40] sm:$0xff] %vm411, %v662
    %712 = vst.msk [vmem:[%s702 + $0x48] sm:$0xff] %vm411, %v663
    %713 = vst.msk [vmem:[%s702 + $0x50] sm:$0xff] %vm411, %v664
    %714 = vst.msk [vmem:[%s702 + $0x58] sm:$0xff] %vm411, %v665
    %715 = vst.msk [vmem:[%s702 + $0x60] sm:$0xff] %vm411, %v666
    %716 = vst.msk [vmem:[%s702 + $0x68] sm:$0xff] %vm411, %v667
    %717 = vst.msk [vmem:[%s702 + $0x70] sm:$0xff] %vm411, %v668
    %718 = vst.msk [vmem:[%s702 + $0x78] sm:$0xff] %vm411, %v669
    %719 = vst.msk [vmem:[%s702 + $0x80] sm:$0xff] %vm411, %v686
    %720 = vst.msk [vmem:[%s702 + $0x88] sm:$0xff] %vm411, %v687
    %721 = vst.msk [vmem:[%s702 + $0x90] sm:$0xff] %vm411, %v688
    %722 = vst.msk [vmem:[%s702 + $0x98] sm:$0xff] %vm411, %v689
    %723 = vst.msk [vmem:[%s702 + $0xa0] sm:$0xff] %vm411, %v690
    %724 = vst.msk [vmem:[%s702 + $0xa8] sm:$0xff] %vm411, %v691
    %725 = vst.msk [vmem:[%s702 + $0xb0] sm:$0xff] %vm411, %v692
    %726 = vst.msk [vmem:[%s702 + $0xb8] sm:$0xff] %vm411, %v693
    %727 = vst.msk [vmem:[%s702 + $0xc0] sm:$0xff] %vm411, %v694
    %728 = vst.msk [vmem:[%s702 + $0xc8] sm:$0xff] %vm411, %v695
    %729 = vst.msk [vmem:[%s702 + $0xd0] sm:$0xff] %vm411, %v696
    %730 = vst.msk [vmem:[%s702 + $0xd8] sm:$0xff] %vm411, %v697
    %731 = vst.msk [vmem:[%s702 + $0xe0] sm:$0xff] %vm411, %v698
    %732 = vst.msk [vmem:[%s702 + $0xe8] sm:$0xff] %vm411, %v699
    %733 = vst.msk [vmem:[%s702 + $0xf0] sm:$0xff] %vm411, %v700
    %734 = vst.msk [vmem:[%s702 + $0xf8] sm:$0xff] %vm411, %v701
    %735 = vxpose.xlu0.b32.start [1/16] %v339, 128
    %736 = vxpose.xlu0.b32.cont [2/16] %v341, 128
    %737 = vxpose.xlu0.b32.cont [3/16] 0.0, 128
    %738 = vxpose.xlu0.b32.cont [4/16] 0.0, 128
    %739 = vxpose.xlu0.b32.cont [5/16] 0.0, 128
    %740 = vxpose.xlu0.b32.cont [6/16] 0.0, 128
    %741 = vxpose.xlu0.b32.cont [7/16] 0.0, 128
    %742 = vxpose.xlu0.b32.cont [8/16] 0.0, 128
    %743 = vxpose.xlu0.b32.cont [9/16] 0.0, 128
    %744 = vxpose.xlu0.b32.cont [10/16] 0.0, 128
    %745 = vxpose.xlu0.b32.cont [11/16] 0.0, 128
    %746 = vxpose.xlu0.b32.cont [12/16] 0.0, 128
    %747 = vxpose.xlu0.b32.cont [13/16] 0.0, 128
    %748 = vxpose.xlu0.b32.cont [14/16] 0.0, 128
    %749 = vxpose.xlu0.b32.cont [15/16] 0.0, 128
    %750 = vxpose.xlu0.b32.end [16/16] 0.0, 128
    %v751 = vpop.trf.xlu0
    %v752 = vpop.trf.xlu0
    %v753 = vpop.trf.xlu0
    %v754 = vpop.trf.xlu0
    %v755 = vpop.trf.xlu0
    %v756 = vpop.trf.xlu0
    %v757 = vpop.trf.xlu0
    %v758 = vpop.trf.xlu0
    %v759 = vpop.trf.xlu0
    %v760 = vpop.trf.xlu0
    %v761 = vpop.trf.xlu0
    %v762 = vpop.trf.xlu0
    %v763 = vpop.trf.xlu0
    %v764 = vpop.trf.xlu0
    %v765 = vpop.trf.xlu0
    %v766 = vpop.trf.xlu0
    %767 = vxpose.xlu0.b32.start [1/16] %v340, 128
    %768 = vxpose.xlu0.b32.cont [2/16] %v342, 128
    %769 = vxpose.xlu0.b32.cont [3/16] 0.0, 128
    %770 = vxpose.xlu0.b32.cont [4/16] 0.0, 128
    %771 = vxpose.xlu0.b32.cont [5/16] 0.0, 128
    %772 = vxpose.xlu0.b32.cont [6/16] 0.0, 128
    %773 = vxpose.xlu0.b32.cont [7/16] 0.0, 128
    %774 = vxpose.xlu0.b32.cont [8/16] 0.0, 128
    %775 = vxpose.xlu0.b32.cont [9/16] 0.0, 128
    %776 = vxpose.xlu0.b32.cont [10/16] 0.0, 128
    %777 = vxpose.xlu0.b32.cont [11/16] 0.0, 128
    %778 = vxpose.xlu0.b32.cont [12/16] 0.0, 128
    %779 = vxpose.xlu0.b32.cont [13/16] 0.0, 128
    %780 = vxpose.xlu0.b32.cont [14/16] 0.0, 128
    %781 = vxpose.xlu0.b32.cont [15/16] 0.0, 128
    %782 = vxpose.xlu0.b32.end [16/16] 0.0, 128
    %v783 = vpop.trf.xlu0
    %v784 = vpop.trf.xlu0
    %v785 = vpop.trf.xlu0
    %v786 = vpop.trf.xlu0
    %v787 = vpop.trf.xlu0
    %v788 = vpop.trf.xlu0
    %v789 = vpop.trf.xlu0
    %v790 = vpop.trf.xlu0
    %v791 = vpop.trf.xlu0
    %v792 = vpop.trf.xlu0
    %v793 = vpop.trf.xlu0
    %v794 = vpop.trf.xlu0
    %v795 = vpop.trf.xlu0
    %v796 = vpop.trf.xlu0
    %v797 = vpop.trf.xlu0
    %v798 = vpop.trf.xlu0
    %s799 = scalar_lea.vmem %s4, 1024
    %800 = vst.msk [vmem:[%s799] sm:$0xff] %vm411, %v751
    %801 = vst.msk [vmem:[%s799 + $0x8] sm:$0xff] %vm411, %v752
    %802 = vst.msk [vmem:[%s799 + $0x10] sm:$0xff] %vm411, %v753
    %803 = vst.msk [vmem:[%s799 + $0x18] sm:$0xff] %vm411, %v754
    %804 = vst.msk [vmem:[%s799 + $0x20] sm:$0xff] %vm411, %v755
    %805 = vst.msk [vmem:[%s799 + $0x28] sm:$0xff] %vm411, %v756
    %806 = vst.msk [vmem:[%s799 + $0x30] sm:$0xff] %vm411, %v757
    %807 = vst.msk [vmem:[%s799 + $0x38] sm:$0xff] %vm411, %v758
    %808 = vst.msk [vmem:[%s799 + $0x40] sm:$0xff] %vm411, %v759
    %809 = vst.msk [vmem:[%s799 + $0x48] sm:$0xff] %vm411, %v760
    %810 = vst.msk [vmem:[%s799 + $0x50] sm:$0xff] %vm411, %v761
    %811 = vst.msk [vmem:[%s799 + $0x58] sm:$0xff] %vm411, %v762
    %812 = vst.msk [vmem:[%s799 + $0x60] sm:$0xff] %vm411, %v763
    %813 = vst.msk [vmem:[%s799 + $0x68] sm:$0xff] %vm411, %v764
    %814 = vst.msk [vmem:[%s799 + $0x70] sm:$0xff] %vm411, %v765
    %815 = vst.msk [vmem:[%s799 + $0x78] sm:$0xff] %vm411, %v766
    %816 = vst.msk [vmem:[%s799 + $0x80] sm:$0xff] %vm411, %v783
    %817 = vst.msk [vmem:[%s799 + $0x88] sm:$0xff] %vm411, %v784
    %818 = vst.msk [vmem:[%s799 + $0x90] sm:$0xff] %vm411, %v785
    %819 = vst.msk [vmem:[%s799 + $0x98] sm:$0xff] %vm411, %v786
    %820 = vst.msk [vmem:[%s799 + $0xa0] sm:$0xff] %vm411, %v787
    %821 = vst.msk [vmem:[%s799 + $0xa8] sm:$0xff] %vm411, %v788
    %822 = vst.msk [vmem:[%s799 + $0xb0] sm:$0xff] %vm411, %v789
    %823 = vst.msk [vmem:[%s799 + $0xb8] sm:$0xff] %vm411, %v790
    %824 = vst.msk [vmem:[%s799 + $0xc0] sm:$0xff] %vm411, %v791
    %825 = vst.msk [vmem:[%s799 + $0xc8] sm:$0xff] %vm411, %v792
    %826 = vst.msk [vmem:[%s799 + $0xd0] sm:$0xff] %vm411, %v793
    %827 = vst.msk [vmem:[%s799 + $0xd8] sm:$0xff] %vm411, %v794
    %828 = vst.msk [vmem:[%s799 + $0xe0] sm:$0xff] %vm411, %v795
    %829 = vst.msk [vmem:[%s799 + $0xe8] sm:$0xff] %vm411, %v796
    %830 = vst.msk [vmem:[%s799 + $0xf0] sm:$0xff] %vm411, %v797
    %831 = vst.msk [vmem:[%s799 + $0xf8] sm:$0xff] %vm411, %v798
    %832 = vxpose.xlu0.b32.start [1/16] %v343, 128
    %833 = vxpose.xlu0.b32.cont [2/16] %v345, 128
    %834 = vxpose.xlu0.b32.cont [3/16] 0.0, 128
    %835 = vxpose.xlu0.b32.cont [4/16] 0.0, 128
    %836 = vxpose.xlu0.b32.cont [5/16] 0.0, 128
    %837 = vxpose.xlu0.b32.cont [6/16] 0.0, 128
    %838 = vxpose.xlu0.b32.cont [7/16] 0.0, 128
    %839 = vxpose.xlu0.b32.cont [8/16] 0.0, 128
    %840 = vxpose.xlu0.b32.cont [9/16] 0.0, 128
    %841 = vxpose.xlu0.b32.cont [10/16] 0.0, 128
    %842 = vxpose.xlu0.b32.cont [11/16] 0.0, 128
    %843 = vxpose.xlu0.b32.cont [12/16] 0.0, 128
    %844 = vxpose.xlu0.b32.cont [13/16] 0.0, 128
    %845 = vxpose.xlu0.b32.cont [14/16] 0.0, 128
    %846 = vxpose.xlu0.b32.cont [15/16] 0.0, 128
    %847 = vxpose.xlu0.b32.end [16/16] 0.0, 128
    %v848 = vpop.trf.xlu0
    %v849 = vpop.trf.xlu0
    %v850 = vpop.trf.xlu0
    %v851 = vpop.trf.xlu0
    %v852 = vpop.trf.xlu0
    %v853 = vpop.trf.xlu0
    %v854 = vpop.trf.xlu0
    %v855 = vpop.trf.xlu0
    %v856 = vpop.trf.xlu0
    %v857 = vpop.trf.xlu0
    %v858 = vpop.trf.xlu0
    %v859 = vpop.trf.xlu0
    %v860 = vpop.trf.xlu0
    %v861 = vpop.trf.xlu0
    %v862 = vpop.trf.xlu0
    %v863 = vpop.trf.xlu0
    %864 = vxpose.xlu0.b32.start [1/16] %v344, 128
    %865 = vxpose.xlu0.b32.cont [2/16] %v346, 128
    %866 = vxpose.xlu0.b32.cont [3/16] 0.0, 128
    %867 = vxpose.xlu0.b32.cont [4/16] 0.0, 128
    %868 = vxpose.xlu0.b32.cont [5/16] 0.0, 128
    %869 = vxpose.xlu0.b32.cont [6/16] 0.0, 128
    %870 = vxpose.xlu0.b32.cont [7/16] 0.0, 128
    %871 = vxpose.xlu0.b32.cont [8/16] 0.0, 128
    %872 = vxpose.xlu0.b32.cont [9/16] 0.0, 128
    %873 = vxpose.xlu0.b32.cont [10/16] 0.0, 128
    %874 = vxpose.xlu0.b32.cont [11/16] 0.0, 128
    %875 = vxpose.xlu0.b32.cont [12/16] 0.0, 128
    %876 = vxpose.xlu0.b32.cont [13/16] 0.0, 128
    %877 = vxpose.xlu0.b32.cont [14/16] 0.0, 128
    %878 = vxpose.xlu0.b32.cont [15/16] 0.0, 128
    %879 = vxpose.xlu0.b32.end [16/16] 0.0, 128
    %v880 = vpop.trf.xlu0
    %v881 = vpop.trf.xlu0
    %v882 = vpop.trf.xlu0
    %v883 = vpop.trf.xlu0
    %v884 = vpop.trf.xlu0
    %v885 = vpop.trf.xlu0
    %v886 = vpop.trf.xlu0
    %v887 = vpop.trf.xlu0
    %v888 = vpop.trf.xlu0
    %v889 = vpop.trf.xlu0
    %v890 = vpop.trf.xlu0
    %v891 = vpop.trf.xlu0
    %v892 = vpop.trf.xlu0
    %v893 = vpop.trf.xlu0
    %v894 = vpop.trf.xlu0
    %v895 = vpop.trf.xlu0
    %s896 = scalar_lea.vmem %s4, 1280
    %897 = vst.msk [vmem:[%s896] sm:$0xff] %vm411, %v848
    %898 = vst.msk [vmem:[%s896 + $0x8] sm:$0xff] %vm411, %v849
    %899 = vst.msk [vmem:[%s896 + $0x10] sm:$0xff] %vm411, %v850
    %900 = vst.msk [vmem:[%s896 + $0x18] sm:$0xff] %vm411, %v851
    %901 = vst.msk [vmem:[%s896 + $0x20] sm:$0xff] %vm411, %v852
    %902 = vst.msk [vmem:[%s896 + $0x28] sm:$0xff] %vm411, %v853
    %903 = vst.msk [vmem:[%s896 + $0x30] sm:$0xff] %vm411, %v854
    %904 = vst.msk [vmem:[%s896 + $0x38] sm:$0xff] %vm411, %v855
    %905 = vst.msk [vmem:[%s896 + $0x40] sm:$0xff] %vm411, %v856
    %906 = vst.msk [vmem:[%s896 + $0x48] sm:$0xff] %vm411, %v857
    %907 = vst.msk [vmem:[%s896 + $0x50] sm:$0xff] %vm411, %v858
    %908 = vst.msk [vmem:[%s896 + $0x58] sm:$0xff] %vm411, %v859
    %909 = vst.msk [vmem:[%s896 + $0x60] sm:$0xff] %vm411, %v860
    %910 = vst.msk [vmem:[%s896 + $0x68] sm:$0xff] %vm411, %v861
    %911 = vst.msk [vmem:[%s896 + $0x70] sm:$0xff] %vm411, %v862
    %912 = vst.msk [vmem:[%s896 + $0x78] sm:$0xff] %vm411, %v863
    %913 = vst.msk [vmem:[%s896 + $0x80] sm:$0xff] %vm411, %v880
    %914 = vst.msk [vmem:[%s896 + $0x88] sm:$0xff] %vm411, %v881
    %915 = vst.msk [vmem:[%s896 + $0x90] sm:$0xff] %vm411, %v882
    %916 = vst.msk [vmem:[%s896 + $0x98] sm:$0xff] %vm411, %v883
    %917 = vst.msk [vmem:[%s896 + $0xa0] sm:$0xff] %vm411, %v884
    %918 = vst.msk [vmem:[%s896 + $0xa8] sm:$0xff] %vm411, %v885
    %919 = vst.msk [vmem:[%s896 + $0xb0] sm:$0xff] %vm411, %v886
    %920 = vst.msk [vmem:[%s896 + $0xb8] sm:$0xff] %vm411, %v887
    %921 = vst.msk [vmem:[%s896 + $0xc0] sm:$0xff] %vm411, %v888
    %922 = vst.msk [vmem:[%s896 + $0xc8] sm:$0xff] %vm411, %v889
    %923 = vst.msk [vmem:[%s896 + $0xd0] sm:$0xff] %vm411, %v890
    %924 = vst.msk [vmem:[%s896 + $0xd8] sm:$0xff] %vm411, %v891
    %925 = vst.msk [vmem:[%s896 + $0xe0] sm:$0xff] %vm411, %v892
    %926 = vst.msk [vmem:[%s896 + $0xe8] sm:$0xff] %vm411, %v893
    %927 = vst.msk [vmem:[%s896 + $0xf0] sm:$0xff] %vm411, %v894
    %928 = vst.msk [vmem:[%s896 + $0xf8] sm:$0xff] %vm411, %v895
    // Predicated region
    $region22: #{tpu_custom_call.1} parent=1 // pred_check
      _
    $region23: #{tpu_custom_call.1} parent=1 // pred_check_branch
      %930 = sbr.rel (0) target = $region25
    $region24: #{tpu_custom_call.1} parent=1 // pred_region
      _
    $region25: #{tpu_custom_call.1} parent=1 // pred_fallthru
      _
    // Predicated region
    $region26: #{tpu_custom_call.1} parent=1 // pred_check
      _
    $region27: #{tpu_custom_call.1} parent=1 // pred_check_branch
      %932 = sbr.rel (0) target = $region29
    $region28: #{tpu_custom_call.1} parent=1 // pred_region
      _
    $region29: #{tpu_custom_call.1} parent=1 // pred_fallthru
      _
    %933 = vsyncpa [#allocation3], 1

</llo_original>
